<compile_context>
chip_gen: v7x
topology: tpu7x:2x2x1
jax: 0.10.0
libtpu: 0.0.40
codegen_flags: <defaults>
</compile_context>

<pallas_src>
import jax
import jax.numpy as jnp
from jax.experimental import pallas as pl
from jax.experimental.pallas import tpu as pltpu


def _round_up(x: int, m: int) -> int:
    return ((x + m - 1) // m) * m


def _choose_tile(dim: int, align: int, target: int):
    """Return (tile, padded_dim): tile divides padded_dim, tile % align == 0."""
    padded = _round_up(dim, align)
    if padded <= target:
        return padded, padded          # one tile covers the whole (padded) dim
    return target, _round_up(dim, target)


# ----------------------------------------------------------------------------
# Kernels
# ----------------------------------------------------------------------------
def _linear_single_pass_kernel(x_ref, w_ref, b_ref, o_ref):
    """Whole K resident in VMEM.  One MXU pass per (tm, tn) output tile.

    x_ref : (tm, Kp)   activations
    w_ref : (Kp, tn)   pre-transposed weight (in_features, out_features)
    b_ref : (1, tn)    bias row
    o_ref : (tm, tn)   output tile
    """
    acc = jnp.dot(x_ref[...], w_ref[...], preferred_element_type=jnp.float32)
    o_ref[...] = (acc * 2.0 + b_ref[...]).astype(o_ref.dtype)


def _linear_ktiled_kernel(x_ref, w_ref, b_ref, o_ref, acc_ref):
    """Fallback for very large in_features: K innermost (reduction) grid axis.

    x_ref : (tm, tk), w_ref : (tk, tn), b_ref : (1, tn), o_ref : (tm, tn)
    acc_ref: (tm, tn) f32 scratch, resident across the K axis.
    """
    k = pl.program_id(2)

    @pl.when(k == 0)
    def _():
        acc_ref[...] = jnp.zeros_like(acc_ref)

    acc_ref[...] += jnp.dot(x_ref[...], w_ref[...],
                            preferred_element_type=jnp.float32)

    @pl.when(k == pl.num_programs(2) - 1)
    def _():
        # x*2 folded here: (2x)@W^T == 2*(x@W^T) exactly.
        o_ref[...] = (acc_ref[...] * 2.0 + b_ref[...]).astype(o_ref.dtype)


# ----------------------------------------------------------------------------
# Wrapper
# ----------------------------------------------------------------------------
def linear_model_forward(x, weight, bias, *,
                         tm_target=256, tn_target=512, tk_target=1024,
                         vmem_budget_bytes=36 << 20,
                         vmem_limit_bytes=48 << 20):
    """Pallas equivalent of:  (x * 2) @ weight.T + bias

    x:      (M, in_features)
    weight: (out_features, in_features)   -- PyTorch nn.Linear layout
    bias:   (out_features,)
    """
    M, K = x.shape
    N, K2 = weight.shape
    assert K == K2, "in_features mismatch"
    dtype_bytes = jnp.dtype(x.dtype).itemsize

    # ---- tile planning ------------------------------------------------------
    tm, Mp = _choose_tile(M, 8, tm_target)       # sublane aligned
    tn, Np = _choose_tile(N, 128, tn_target)     # lane aligned
    # v7x: ensure >= 2 blocks on a parallel axis so both TensorCores get work.
    if (Mp // tm) == 1 and (Np // tn) == 1 and Np >= 256 and (Np // 2) % 128 == 0:
        tn = Np // 2

    Kp_full = _round_up(K, 128)
    # Double-buffered x + W tiles, plus output and bias, all in VMEM?
    single_pass_bytes = 2 * dtype_bytes * (tm * Kp_full + Kp_full * tn
                                           + tm * tn + tn)
    single_pass = single_pass_bytes <= vmem_budget_bytes
    if single_pass:
        tk, Kp = Kp_full, Kp_full
    else:
        tk, Kp = _choose_tile(K, 128, tk_target)

    # ---- one-time wrapper-side layout work ----------------------------------
    w_t = weight.T                                            # (K, N)
    x_p = x if (Mp, Kp) == (M, K) else jnp.pad(x, ((0, Mp - M), (0, Kp - K)))
    w_p = w_t if (Kp, Np) == (K, N) else jnp.pad(w_t, ((0, Kp - K), (0, Np - N)))
    b_p = (bias if Np == N else jnp.pad(bias, (0, Np - N))).reshape(1, Np)

    cost = pl.CostEstimate(
        flops=2 * M * N * K + 2 * M * N,
        transcendentals=0,
        bytes_accessed=(M * K + K * N + N + M * N) * dtype_bytes,
    )
    compiler_params = pltpu.CompilerParams(
        dimension_semantics=(("parallel", "parallel") if single_pass
                             else ("parallel", "parallel", "arbitrary")),
        vmem_limit_bytes=vmem_limit_bytes,
    )

    if single_pass:
        grid = (Mp // tm, Np // tn)
        out_p = pl.pallas_call(
            _linear_single_pass_kernel,
            out_shape=jax.ShapeDtypeStruct((Mp, Np), x.dtype),
            grid_spec=pltpu.PrefetchScalarGridSpec(
                num_scalar_prefetch=0,
                grid=grid,
                in_specs=[
                    pl.BlockSpec((tm, Kp), lambda i, j: (i, 0)),   # x
                    pl.BlockSpec((Kp, tn), lambda i, j: (0, j)),   # W^T
                    pl.BlockSpec((1, tn), lambda i, j: (0, j)),    # bias
                ],
                out_specs=pl.BlockSpec((tm, tn), lambda i, j: (i, j)),
            ),
            compiler_params=compiler_params,
            cost_estimate=cost,
        )(x_p, w_p, b_p)
    else:
        grid = (Mp // tm, Np // tn, Kp // tk)
        out_p = pl.pallas_call(
            _linear_ktiled_kernel,
            out_shape=jax.ShapeDtypeStruct((Mp, Np), x.dtype),
            grid_spec=pltpu.PrefetchScalarGridSpec(
                num_scalar_prefetch=0,
                grid=grid,
                in_specs=[
                    pl.BlockSpec((tm, tk), lambda i, j, k: (i, k)),   # x
                    pl.BlockSpec((tk, tn), lambda i, j, k: (k, j)),   # W^T
                    pl.BlockSpec((1, tn), lambda i, j, k: (0, j)),    # bias
                ],
                out_specs=pl.BlockSpec((tm, tn), lambda i, j, k: (i, j)),
                scratch_shapes=[pltpu.VMEM((tm, tn), jnp.float32)],
            ),
            compiler_params=compiler_params,
            cost_estimate=cost,
        )(x_p, w_p, b_p)

    if (Mp, Np) != (M, N):
        out_p = out_p[:M, :N]
    return out_p


if __name__ == "__main__":
    # Small shapes consistent with LinearModel(in_features, out_features).
    M, in_features, out_features = 8, 32, 64

    key = jax.random.PRNGKey(0)
    kx, kw, kb = jax.random.split(key, 3)

    x = jax.random.normal(kx, (M, in_features), dtype=jnp.float32)
    bound = 1.0 / (in_features ** 0.5)
    weight = jax.random.uniform(kw, (out_features, in_features),
                                minval=-bound, maxval=bound, dtype=jnp.float32)
    bias = jax.random.uniform(kb, (out_features,),
                              minval=-bound, maxval=bound, dtype=jnp.float32)

    out = linear_model_forward(x, weight, bias)
    out = jax.block_until_ready(out)

    # Reference check against plain JAX (same math as the PyTorch module).
    ref = (x * 2.0) @ weight.T + bias
    assert out.shape == (M, out_features)
    assert jnp.allclose(out, ref, atol=1e-5, rtol=1e-5)

    print("KERNEL_OK")
</pallas_src>

<mosaic_0001>
module attributes {stable_mosaic.version = 11 : i64} {
  func.func @_linear_single_pass_kernel(%arg0: i32, %arg1: i32, %arg2: memref<8x128xf32, #tpu.memory_space<vmem>>, %arg3: memref<128x128xf32, #tpu.memory_space<vmem>>, %arg4: memref<1x128xf32, #tpu.memory_space<vmem>>, %arg5: memref<8x128xf32, #tpu.memory_space<vmem>>) attributes {dimension_semantics = [#tpu.dimension_semantics<parallel>, #tpu.dimension_semantics<parallel>], iteration_bounds = array<i64: 1, 1>, scalar_prefetch = 0 : i64, scratch_operands = 0 : i64, tpu.core_type = #tpu.core_type<tc>, window_params = [{transform_indices = @transform_0, window_bounds = array<i64: 8, 128>}, {transform_indices = @transform_1, window_bounds = array<i64: 128, 128>}, {transform_indices = @transform_2, window_bounds = array<i64: 1, 128>}, {transform_indices = @transform_3, window_bounds = array<i64: 8, 128>}]} {
    %c0 = arith.constant 0 : index
    %c0_0 = arith.constant 0 : index
    %0 = vector.load %arg2[%c0, %c0_0] : memref<8x128xf32, #tpu.memory_space<vmem>>, vector<8x128xf32>
    %c0_1 = arith.constant 0 : index
    %c0_2 = arith.constant 0 : index
    %1 = vector.load %arg3[%c0_1, %c0_2] : memref<128x128xf32, #tpu.memory_space<vmem>>, vector<128x128xf32>
    %cst = arith.constant dense<0.000000e+00> : vector<8x128xf32>
    %2 = tpu.matmul %0, %1, %cst {dimension_numbers = #tpu.dot_dimension_numbers<[1], [0], [0], [1], [0, 0, 1, 1], [], []>} : vector<8x128xf32>, vector<128x128xf32>, vector<8x128xf32> -> vector<8x128xf32>
    %cst_3 = arith.constant 2.000000e+00 : f32
    %3 = vector.broadcast %cst_3 : f32 to vector<8x128xf32>
    %4 = arith.mulf %2, %3 : vector<8x128xf32>
    %c0_4 = arith.constant 0 : index
    %c0_5 = arith.constant 0 : index
    %5 = vector.load %arg4[%c0_4, %c0_5] : memref<1x128xf32, #tpu.memory_space<vmem>>, vector<1x128xf32>
    %6 = vector.broadcast %5 : vector<1x128xf32> to vector<8x128xf32>
    %7 = arith.addf %4, %6 : vector<8x128xf32>
    %c0_6 = arith.constant 0 : index
    %c0_7 = arith.constant 0 : index
    %8 = vector.load %arg5[%c0_6, %c0_7] : memref<8x128xf32, #tpu.memory_space<vmem>>, vector<8x128xf32>
    tpu.vector_store %arg5[%c0_6, %c0_7], %7 {strides = array<i32>} : memref<8x128xf32, #tpu.memory_space<vmem>>, vector<8x128xf32>,
    return
  }
  func.func @transform_0(%arg0: i32, %arg1: i32) -> (i32, i32) {
    %c0_i32 = arith.constant 0 : i32
    %c0_i32_0 = arith.constant 0 : i32
    return %arg0, %c0_i32 : i32, i32
  }
  func.func @transform_1(%arg0: i32, %arg1: i32) -> (i32, i32) {
    %c0_i32 = arith.constant 0 : i32
    %c0_i32_0 = arith.constant 0 : i32
    return %c0_i32, %arg1 : i32, i32
  }
  func.func @transform_2(%arg0: i32, %arg1: i32) -> (i32, i32) {
    %c0_i32 = arith.constant 0 : i32
    %c0_i32_0 = arith.constant 0 : i32
    return %c0_i32, %arg1 : i32, i32
  }
  func.func @transform_3(%arg0: i32, %arg1: i32) -> (i32, i32) {
    %c0_i32 = arith.constant 0 : i32
    return %arg0, %arg1 : i32, i32
  }
}

</mosaic_0001>

<llo_original>
// kernel: tpu_custom_call.1
$region0: #{tpu_custom_call.1}
  #allocation0 [shape = 'u32[]', space=smem, size = 0x4, offset = 0x4, fixed_abs, tag = 'smem constant byte address 0x4 - core index']
  #allocation1 [shape = 'u32[144,128]{1,0:T(1,128)}', space=vmem, size = 0x12000, scoped, tag = 'internal scratch']
  %s0 = inlined_call_operand.hbm [shape: f32[8,128], index: 0, kind: input, shape index: {}]
  %s1 = inlined_call_operand.hbm [shape: f32[128,128], index: 1, kind: input, shape index: {}]
  %s2 = inlined_call_operand.vmem [shape: f32[1,128], index: 2, kind: input, shape index: {}]
  %s3 = inlined_call_operand.hbm [shape: f32[8,128], index: 3, kind: output, shape index: {}]
  %s4 = sld [smem:[#allocation0]]
  $region30: #{tpu_custom_call.1} parent=0
    _
  %s6 = ssub.s32 1, %s4
  %s7 = scalar_select 0, %s6, %s4
  $region1: #{tpu_custom_call.1} parent=0
    #allocation2 [shape = 'u8[4096]{0}', space=vmem, size = 0x1000, scoped, tag = 'input window, operand 0, single buffered']
    #allocation3 [shape = 's32[1]{0}', space=sflag, size = 0x4, scoped, tag = 'scoped memory for tpu_custom_call.1']
    #allocation4 [shape = 's32[1]{0}', space=sflag, size = 0x4, scoped, tag = 'scoped memory for tpu_custom_call.1']
    #allocation5 [shape = 'u8[65536]{0}', space=vmem, size = 0x10000, scoped, tag = 'input window, operand 1, single buffered']
    #allocation6 [shape = 's32[1]{0}', space=sflag, size = 0x4, scoped, tag = 'scoped memory for tpu_custom_call.1']
    #allocation7 [shape = 'u8[4096]{0}', space=vmem, size = 0x1000, scoped, tag = 'output window, operand 0, single buffered']
    %8 = vsyncpa [#allocation3], 0
    %9 = vsyncpa [#allocation6], 0
    %10 = vsyncpa [#allocation4], 0
    // Predicated region
    $region2: #{tpu_custom_call.1} parent=1 // pred_check
      _
    $region3: #{tpu_custom_call.1} parent=1 // pred_check_branch
      %12 = sbr.rel (0) target = $region5
    $region4: #{tpu_custom_call.1} parent=1 // pred_region
      %s14 = ssub.s32 128, 128
      %15 = vsyncadd [#allocation3], %s14
      %s17 = sshll.u32 [#allocation2], 4
      %s18 = int_to_ptr.vmem [resolvable:$true] %s17
      %20 = dma.hbm_to_vmem [thread:$0]  %s0, 128, %s18, [#allocation3]
    $region5: #{tpu_custom_call.1} parent=1 // pred_fallthru
      _
    // Predicated region
    $region6: #{tpu_custom_call.1} parent=1 // pred_check
      _
    $region7: #{tpu_custom_call.1} parent=1 // pred_check_branch
      %22 = sbr.rel (0) target = $region9
    $region8: #{tpu_custom_call.1} parent=1 // pred_region
      %s24 = ssub.s32 2048, 2048
      %25 = vsyncadd [#allocation6], %s24
      %s26 = sshll.u32 [#allocation5], 4
      %s27 = int_to_ptr.vmem [resolvable:$true] %s26
      %32 = dma.hbm_to_vmem [thread:$0]  %s1, 2048, %s27, [#allocation6], 128, 128, 8
    $region9: #{tpu_custom_call.1} parent=1 // pred_fallthru
      _
    // Predicated region
    $region10: #{tpu_custom_call.1} parent=1 // pred_check
      _
    $region11: #{tpu_custom_call.1} parent=1 // pred_check_branch
      %34 = sbr.rel (0) target = $region13
    $region12: #{tpu_custom_call.1} parent=1 // pred_region
      _
    $region13: #{tpu_custom_call.1} parent=1 // pred_fallthru
      _
    // Predicated region
    $region14: #{tpu_custom_call.1} parent=1 // pred_check
      _
    $region15: #{tpu_custom_call.1} parent=1 // pred_check_branch
      %36 = sbr.rel (0) target = $region17
    $region16: #{tpu_custom_call.1} parent=1 // pred_region
      %37 = dma.done [#allocation3], 128
    $region17: #{tpu_custom_call.1} parent=1 // pred_fallthru
      _
    // Predicated region
    $region18: #{tpu_custom_call.1} parent=1 // pred_check
      _
    $region19: #{tpu_custom_call.1} parent=1 // pred_check_branch
      %39 = sbr.rel (0) target = $region21
    $region20: #{tpu_custom_call.1} parent=1 // pred_region
      %40 = dma.done [#allocation6], 2048
    $region21: #{tpu_custom_call.1} parent=1 // pred_fallthru
      _
    %v41 = vld [vmem:[#allocation2] sm:$0xff]
    %v42 = vld [vmem:[#allocation5] sm:$0xff]
    %v43 = vld [vmem:[#allocation5 + $0x8] sm:$0xff]
    %v44 = vld [vmem:[#allocation5 + $0x10] sm:$0xff]
    %v45 = vld [vmem:[#allocation5 + $0x18] sm:$0xff]
    %v46 = vld [vmem:[#allocation5 + $0x20] sm:$0xff]
    %v47 = vld [vmem:[#allocation5 + $0x28] sm:$0xff]
    %v48 = vld [vmem:[#allocation5 + $0x30] sm:$0xff]
    %v49 = vld [vmem:[#allocation5 + $0x38] sm:$0xff]
    %v50 = vld [vmem:[#allocation5 + $0x40] sm:$0xff]
    %v51 = vld [vmem:[#allocation5 + $0x48] sm:$0xff]
    %v52 = vld [vmem:[#allocation5 + $0x50] sm:$0xff]
    %v53 = vld [vmem:[#allocation5 + $0x58] sm:$0xff]
    %v54 = vld [vmem:[#allocation5 + $0x60] sm:$0xff]
    %v55 = vld [vmem:[#allocation5 + $0x68] sm:$0xff]
    %v56 = vld [vmem:[#allocation5 + $0x70] sm:$0xff]
    %v57 = vld [vmem:[#allocation5 + $0x78] sm:$0xff]
    %58 = vmatprep.subr.mxu0 0.0
    %59 = vmatpush1.msra.mxu0 %v42
    %60 = vmatprep.subr.mxu0 0.0
    %61 = vmatpush1.msra.mxu0 %v43
    %62 = vmatprep.subr.mxu0 0.0
    %63 = vmatpush1.msra.mxu0 %v44
    %64 = vmatprep.subr.mxu0 0.0
    %65 = vmatpush1.msra.mxu0 %v45
    %66 = vmatprep.subr.mxu0 0.0
    %67 = vmatpush1.msra.mxu0 %v46
    %68 = vmatprep.subr.mxu0 0.0
    %69 = vmatpush1.msra.mxu0 %v47
    %70 = vmatprep.subr.mxu0 0.0
    %71 = vmatpush1.msra.mxu0 %v48
    %72 = vmatprep.subr.mxu0 0.0
    %73 = vmatpush1.msra.mxu0 %v49
    %74 = vmatprep.subr.mxu0 0.0
    %75 = vmatpush1.msra.mxu0 %v50
    %76 = vmatprep.subr.mxu0 0.0
    %77 = vmatpush1.msra.mxu0 %v51
    %78 = vmatprep.subr.mxu0 0.0
    %79 = vmatpush1.msra.mxu0 %v52
    %80 = vmatprep.subr.mxu0 0.0
    %81 = vmatpush1.msra.mxu0 %v53
    %82 = vmatprep.subr.mxu0 0.0
    %83 = vmatpush1.msra.mxu0 %v54
    %84 = vmatprep.subr.mxu0 0.0
    %85 = vmatpush1.msra.mxu0 %v55
    %86 = vmatprep.subr.mxu0 0.0
    %87 = vmatpush1.msra.mxu0 %v56
    %88 = vmatprep.subr.mxu0 0.0
    %89 = vmatpush1.msra.mxu0 %v57
    %90 = vmatprep.subr.mxu0 0.0
    %91 = vmatpush1.msra.mxu0 0.0
    %92 = vmatprep.subr.mxu0 0.0
    %93 = vmatpush1.msra.mxu0 0.0
    %94 = vmatprep.subr.mxu0 0.0
    %95 = vmatpush1.msra.mxu0 0.0
    %96 = vmatprep.subr.mxu0 0.0
    %97 = vmatpush1.msra.mxu0 0.0
    %98 = vmatprep.subr.mxu0 0.0
    %99 = vmatpush1.msra.mxu0 0.0
    %100 = vmatprep.subr.mxu0 0.0
    %101 = vmatpush1.msra.mxu0 0.0
    %102 = vmatprep.subr.mxu0 0.0
    %103 = vmatpush1.msra.mxu0 0.0
    %104 = vmatprep.subr.mxu0 0.0
    %105 = vmatpush1.msra.mxu0 0.0
    %106 = vmatprep.subr.mxu0 0.0
    %107 = vmatpush1.msra.mxu0 0.0
    %108 = vmatprep.subr.mxu0 0.0
    %109 = vmatpush1.msra.mxu0 0.0
    %110 = vmatprep.subr.mxu0 0.0
    %111 = vmatpush1.msra.mxu0 0.0
    %112 = vmatprep.subr.mxu0 0.0
    %113 = vmatpush1.msra.mxu0 0.0
    %114 = vmatprep.subr.mxu0 0.0
    %115 = vmatpush1.msra.mxu0 0.0
    %116 = vmatprep.subr.mxu0 0.0
    %117 = vmatpush1.msra.mxu0 0.0
    %118 = vmatprep.subr.mxu0 0.0
    %119 = vmatpush1.msra.mxu0 0.0
    %120 = vmatprep.subr.mxu0 0.0
    %121 = vmatpush1.msra.mxu0 0.0
    %122 = vmatprep.mubr.f32.mxu0 0.0
    %123 = vmatmul.mubr.f32.gmra.mrb[0].mxu0 %v41
    %v124 = vpop.f32.mrb[0].mxu0
    %v125 = vadd.f32 0.0, %v124
    %v126 = vpop.f32.mrb[0].mxu0
    %127 = vdwg.mxu0
    %v128 = vmul.f32 %v125, 2.0
    %v129 = vld [vmem:[%s2] sm:$0x1]
    %v131 = vlaneseq
    %v132 = vshrl.u32 %v131, 7
    %v133 = vsub.s32 0, %v132
    %v134 = vrot.slane %v129, %v133
    %v136 = vadd.f32 %v128, %v134
    %137 = vst [vmem:[#allocation7] sm:$0xff] %v136
    // Predicated region
    $region22: #{tpu_custom_call.1} parent=1 // pred_check
      _
    $region23: #{tpu_custom_call.1} parent=1 // pred_check_branch
      %139 = sbr.rel (0) target = $region25
    $region24: #{tpu_custom_call.1} parent=1 // pred_region
      %s141 = ssub.s32 128, 128
      %142 = vsyncadd [#allocation4], %s141
      %s144 = sshll.u32 [#allocation7], 4
      %s145 = int_to_ptr.vmem [resolvable:$true] %s144
      %147 = dma.vmem_to_hbm [thread:$0]  %s145, 128, %s3, [#allocation4]
    $region25: #{tpu_custom_call.1} parent=1 // pred_fallthru
      _
    // Predicated region
    $region26: #{tpu_custom_call.1} parent=1 // pred_check
      _
    $region27: #{tpu_custom_call.1} parent=1 // pred_check_branch
      %149 = sbr.rel (0) target = $region29
    $region28: #{tpu_custom_call.1} parent=1 // pred_region
      %150 = dma.done [#allocation4], 128
    $region29: #{tpu_custom_call.1} parent=1 // pred_fallthru
      _
    %151 = vsyncpa [#allocation3], 1
    %152 = vsyncpa [#allocation6], 1
    %153 = vsyncpa [#allocation4], 1

</llo_original>
